<compile_context>
chip_gen: v7x
topology: tpu7x:2x2x1
jax: 0.10.0
libtpu: 0.0.40
codegen_flags: <defaults>
</compile_context>

<pallas_src>
import jax
import jax.numpy as jnp
from jax.experimental import pallas as pl
from jax.experimental.pallas import tpu as pltpu


def _round_up(x, m):
    return ((x + m - 1) // m) * m


def gat_kernel(neigh_ref, maskb_ref, proj_ref, bias_ref, out_ref):
    # neigh_ref : (tm, K*H) bf16   [src ; n_1 ; ... ; n_N] per row
    # maskb_ref : (tm, K)   f32    additive mask bias (0 for the src slot)
    # proj_ref  : (K*H, K)  f32    folded Linear(2H -> 1) weights, one column per slot
    # bias_ref  : (1, K)    f32    Linear bias, broadcast over slots
    # out_ref   : (tm, H)   f32
    K = maskb_ref.shape[-1]
    H = out_ref.shape[-1]

    x = neigh_ref[...].astype(jnp.float32)                           # (tm, K*H)

    # score_k = LeakyReLU_0.2( src.w_src + neigh_k.w_ngh + b ), all K at once on MXU
    s = jnp.dot(x, proj_ref[...], preferred_element_type=jnp.float32)  # (tm, K)
    s = s + bias_ref[...]
    s = jnp.where(s >= 0, s, 0.2 * s)
    s = s + maskb_ref[...]                                            # masked slots -> -1e9

    # softmax over the K slots
    m = jnp.max(s, axis=-1, keepdims=True)
    e = jnp.exp(s - m)
    denom = jnp.sum(e, axis=-1, keepdims=True)
    att = e * pl.reciprocal(denom, approx=True)                       # (tm, K)

    # out = sum_k att[:, k] * neigh_k  (static lane slices; K is small)
    acc = att[:, 0:1] * x[:, 0:H]
    for k in range(1, K):
        acc = acc + att[:, k:k + 1] * x[:, k * H:(k + 1) * H]
    out_ref[...] = acc


def gat_forward(node_ids, neighs, mask, emb_table, a_w, a_b, *, tm=1024):
    B, S = node_ids.shape
    N = neighs.shape[-1]
    H = emb_table.shape[-1]
    K = N + 1
    M = B * S

    # ---- glue: embedding gather (bf16 to halve HBM bytes) + flat lane-dense layouts
    # TODO(synk): fuse the embedding gather into the kernel (scalar-prefetch the
    # indices + gather from a VMEM-resident table) to avoid the HBM round-trip
    # of the (M, K*H) neighbour slab.
    idx = jnp.concatenate([node_ids[..., None], neighs], axis=-1).reshape(M, K)
    neigh_flat = emb_table.astype(jnp.bfloat16)[idx].reshape(M, K * H)   # (M, K*H)

    maskb = jnp.concatenate(
        [jnp.zeros((M, 1), jnp.float32),
         mask.reshape(M, N).astype(jnp.float32) * (-1e9)], axis=-1)      # (M, K)

    w = a_w.reshape(2 * H).astype(jnp.float32)
    proj = jnp.kron(jnp.eye(K, dtype=jnp.float32), w[H:][:, None])       # (K*H, K)
    proj = proj.at[:H, :].add(w[:H][:, None])
    bias_row = jnp.broadcast_to(
        a_b.astype(jnp.float32).reshape(1, 1), (1, K))                   # (1, K)

    # ---- tiling: large lane-dense row tiles; pad M so the grid divides evenly
    tm = _round_up(max(8, min(tm, _round_up(M, 8))), 8)
    M_pad = _round_up(M, tm)
    if M_pad != M:
        pad = M_pad - M
        neigh_flat = jnp.pad(neigh_flat, ((0, pad), (0, 0)))
        maskb = jnp.pad(maskb, ((0, pad), (0, 0)))

    out = pl.pallas_call(
        gat_kernel,
        out_shape=jax.ShapeDtypeStruct((M_pad, H), jnp.float32),
        grid_spec=pltpu.PrefetchScalarGridSpec(
            num_scalar_prefetch=0,
            grid=(M_pad // tm,),
            in_specs=[
                pl.BlockSpec((tm, K * H), lambda i: (i, 0)),
                pl.BlockSpec((tm, K), lambda i: (i, 0)),
                pl.BlockSpec((K * H, K), lambda i: (0, 0)),
                pl.BlockSpec((1, K), lambda i: (0, 0)),
            ],
            out_specs=pl.BlockSpec((tm, H), lambda i: (i, 0)),
        ),
        compiler_params=pltpu.CompilerParams(
            dimension_semantics=("parallel",)),
    )(neigh_flat, maskb, proj, bias_row)

    return out[:M].reshape(B, S, H)


def gat_reference(node_ids, neighs, mask, emb_table, a_w, a_b):
    # pure-JAX transcription of the PyTorch forward
    src = emb_table[node_ids][:, :, None, :]                        # (B,S,1,H)
    ngh = emb_table[neighs]                                         # (B,S,N,H)
    neigh_cat = jnp.concatenate([src, ngh], axis=2)                 # (B,S,K,H)
    embs = jnp.concatenate(
        [jnp.broadcast_to(src, neigh_cat.shape), neigh_cat], axis=-1)
    scores = embs @ a_w.T + a_b                                     # (B,S,K,1)
    scores = jnp.where(scores >= 0, scores, 0.2 * scores)
    scores = scores.at[:, :, 1:].add(mask * (-1e9))
    att = jax.nn.softmax(scores, axis=2)
    out = jnp.matmul(jnp.swapaxes(att, 3, 2), neigh_cat)            # (B,S,1,H)
    return out.reshape(node_ids.shape[0], node_ids.shape[1], -1)


if __name__ == "__main__":
    B, S = 2, 8
    max_neighbors = 7          # K = 8
    hidden_size = 32
    num_nodes = 20

    key = jax.random.PRNGKey(0)
    k_emb, k_w, k_b, k_ids, k_ngh, k_msk = jax.random.split(key, 6)

    # deterministic synthetic parameters (module __init__ shapes); embedding
    # values rounded to bf16 so the kernel's bf16 transfer is lossless and the
    # f32 reference comparison stays tight.
    emb_table = (jax.random.normal(k_emb, (num_nodes + 1, hidden_size),
                                   jnp.float32) * 0.1)
    emb_table = emb_table.astype(jnp.bfloat16).astype(jnp.float32)
    a_w = jax.random.normal(k_w, (1, 2 * hidden_size), jnp.float32) * 0.1
    a_b = jax.random.normal(k_b, (1,), jnp.float32) * 0.1

    node_ids = jax.random.randint(k_ids, (B, S), 0, num_nodes + 1)
    neighs = jax.random.randint(k_ngh, (B, S, max_neighbors), 0, num_nodes + 1)
    mask = jax.random.bernoulli(
        k_msk, 0.3, (B, S, max_neighbors, 1)).astype(jnp.float32)

    out = gat_forward(node_ids, neighs, mask, emb_table, a_w, a_b)
    out = jax.block_until_ready(out)

    ref = gat_reference(node_ids, neighs, mask, emb_table, a_w, a_b)
    assert out.shape == (B, S, hidden_size)
    assert jnp.allclose(out, ref, atol=5e-3, rtol=5e-3), "mismatch vs reference"

    print("KERNEL_OK")
</pallas_src>

<mosaic_0001>
module attributes {stable_mosaic.version = 11 : i64} {
  func.func @gat_kernel(%arg0: i32, %arg1: memref<16x256xbf16, #tpu.memory_space<vmem>>, %arg2: memref<16x8xf32, #tpu.memory_space<vmem>>, %arg3: memref<256x8xf32, #tpu.memory_space<vmem>>, %arg4: memref<1x8xf32, #tpu.memory_space<vmem>>, %arg5: memref<16x32xf32, #tpu.memory_space<vmem>>) attributes {dimension_semantics = [#tpu.dimension_semantics<parallel>], iteration_bounds = array<i64: 1>, scalar_prefetch = 0 : i64, scratch_operands = 0 : i64, tpu.core_type = #tpu.core_type<tc>, window_params = [{transform_indices = @transform_0, window_bounds = array<i64: 16, 256>}, {transform_indices = @transform_1, window_bounds = array<i64: 16, 8>}, {pipeline_mode = #tpu.pipeline_mode<synchronous>, transform_indices = @transform_2, window_bounds = array<i64: 256, 8>}, {pipeline_mode = #tpu.pipeline_mode<synchronous>, transform_indices = @transform_3, window_bounds = array<i64: 1, 8>}, {transform_indices = @transform_4, window_bounds = array<i64: 16, 32>}]} {
    %c0 = arith.constant 0 : index
    %c0_0 = arith.constant 0 : index
    %0 = vector.load %arg1[%c0, %c0_0] : memref<16x256xbf16, #tpu.memory_space<vmem>>, vector<16x256xbf16>
    %1 = arith.extf %0 : vector<16x256xbf16> to vector<16x256xf32>
    %c0_1 = arith.constant 0 : index
    %c0_2 = arith.constant 0 : index
    %2 = vector.load %arg3[%c0_1, %c0_2] : memref<256x8xf32, #tpu.memory_space<vmem>>, vector<256x8xf32>
    %cst = arith.constant dense<0.000000e+00> : vector<16x8xf32>
    %3 = tpu.matmul %1, %2, %cst {dimension_numbers = #tpu.dot_dimension_numbers<[1], [0], [0], [1], [0, 0, 1, 1], [], []>} : vector<16x256xf32>, vector<256x8xf32>, vector<16x8xf32> -> vector<16x8xf32>
    %c0_3 = arith.constant 0 : index
    %c0_4 = arith.constant 0 : index
    %4 = vector.load %arg4[%c0_3, %c0_4] : memref<1x8xf32, #tpu.memory_space<vmem>>, vector<1x8xf32>
    %5 = vector.broadcast %4 : vector<1x8xf32> to vector<16x8xf32>
    %6 = arith.addf %3, %5 : vector<16x8xf32>
    %cst_5 = arith.constant 0.000000e+00 : f32
    %7 = vector.broadcast %cst_5 : f32 to vector<16x8xf32>
    %8 = arith.cmpf oge, %6, %7 : vector<16x8xf32>
    %cst_6 = arith.constant 2.000000e-01 : f32
    %9 = vector.broadcast %cst_6 : f32 to vector<16x8xf32>
    %10 = arith.mulf %9, %6 : vector<16x8xf32>
    %11 = arith.select %8, %6, %10 : vector<16x8xi1>, vector<16x8xf32>
    %c0_7 = arith.constant 0 : index
    %c0_8 = arith.constant 0 : index
    %12 = vector.load %arg2[%c0_7, %c0_8] : memref<16x8xf32, #tpu.memory_space<vmem>>, vector<16x8xf32>
    %13 = arith.addf %11, %12 : vector<16x8xf32>
    %cst_9 = arith.constant dense<0xFF800000> : vector<16xf32>
    %14 = vector.multi_reduction <maximumf>, %13, %cst_9 [1] : vector<16x8xf32> to vector<16xf32>
    %15 = vector.shape_cast %14 : vector<16xf32> to vector<16x1xf32>
    %16 = vector.broadcast %15 : vector<16x1xf32> to vector<16x8xf32>
    %17 = arith.subf %13, %16 : vector<16x8xf32>
    %18 = math.exp %17 : vector<16x8xf32>
    %cst_10 = arith.constant dense<0.000000e+00> : vector<16xf32>
    %19 = vector.multi_reduction <add>, %18, %cst_10 [1] : vector<16x8xf32> to vector<16xf32>
    %20 = vector.shape_cast %19 : vector<16xf32> to vector<16x1xf32>
    %21 = tpu.reciprocal %20 {approx = true} : vector<16x1xf32> -> vector<16x1xf32>
    %22 = vector.broadcast %21 : vector<16x1xf32> to vector<16x8xf32>
    %23 = arith.mulf %18, %22 : vector<16x8xf32>
    %24 = vector.extract_strided_slice %23 {offsets = [0, 0], sizes = [16, 1], strides = [1, 1]} : vector<16x8xf32> to vector<16x1xf32>
    %25 = vector.extract_strided_slice %1 {offsets = [0, 0], sizes = [16, 32], strides = [1, 1]} : vector<16x256xf32> to vector<16x32xf32>
    %26 = vector.broadcast %24 : vector<16x1xf32> to vector<16x32xf32>
    %27 = arith.mulf %26, %25 : vector<16x32xf32>
    %28 = vector.extract_strided_slice %23 {offsets = [0, 1], sizes = [16, 1], strides = [1, 1]} : vector<16x8xf32> to vector<16x1xf32>
    %29 = vector.extract_strided_slice %1 {offsets = [0, 32], sizes = [16, 32], strides = [1, 1]} : vector<16x256xf32> to vector<16x32xf32>
    %30 = vector.broadcast %28 : vector<16x1xf32> to vector<16x32xf32>
    %31 = arith.mulf %30, %29 : vector<16x32xf32>
    %32 = arith.addf %27, %31 : vector<16x32xf32>
    %33 = vector.extract_strided_slice %23 {offsets = [0, 2], sizes = [16, 1], strides = [1, 1]} : vector<16x8xf32> to vector<16x1xf32>
    %34 = vector.extract_strided_slice %1 {offsets = [0, 64], sizes = [16, 32], strides = [1, 1]} : vector<16x256xf32> to vector<16x32xf32>
    %35 = vector.broadcast %33 : vector<16x1xf32> to vector<16x32xf32>
    %36 = arith.mulf %35, %34 : vector<16x32xf32>
    %37 = arith.addf %32, %36 : vector<16x32xf32>
    %38 = vector.extract_strided_slice %23 {offsets = [0, 3], sizes = [16, 1], strides = [1, 1]} : vector<16x8xf32> to vector<16x1xf32>
    %39 = vector.extract_strided_slice %1 {offsets = [0, 96], sizes = [16, 32], strides = [1, 1]} : vector<16x256xf32> to vector<16x32xf32>
    %40 = vector.broadcast %38 : vector<16x1xf32> to vector<16x32xf32>
    %41 = arith.mulf %40, %39 : vector<16x32xf32>
    %42 = arith.addf %37, %41 : vector<16x32xf32>
    %43 = vector.extract_strided_slice %23 {offsets = [0, 4], sizes = [16, 1], strides = [1, 1]} : vector<16x8xf32> to vector<16x1xf32>
    %44 = vector.extract_strided_slice %1 {offsets = [0, 128], sizes = [16, 32], strides = [1, 1]} : vector<16x256xf32> to vector<16x32xf32>
    %45 = vector.broadcast %43 : vector<16x1xf32> to vector<16x32xf32>
    %46 = arith.mulf %45, %44 : vector<16x32xf32>
    %47 = arith.addf %42, %46 : vector<16x32xf32>
    %48 = vector.extract_strided_slice %23 {offsets = [0, 5], sizes = [16, 1], strides = [1, 1]} : vector<16x8xf32> to vector<16x1xf32>
    %49 = vector.extract_strided_slice %1 {offsets = [0, 160], sizes = [16, 32], strides = [1, 1]} : vector<16x256xf32> to vector<16x32xf32>
    %50 = vector.broadcast %48 : vector<16x1xf32> to vector<16x32xf32>
    %51 = arith.mulf %50, %49 : vector<16x32xf32>
    %52 = arith.addf %47, %51 : vector<16x32xf32>
    %53 = vector.extract_strided_slice %23 {offsets = [0, 6], sizes = [16, 1], strides = [1, 1]} : vector<16x8xf32> to vector<16x1xf32>
    %54 = vector.extract_strided_slice %1 {offsets = [0, 192], sizes = [16, 32], strides = [1, 1]} : vector<16x256xf32> to vector<16x32xf32>
    %55 = vector.broadcast %53 : vector<16x1xf32> to vector<16x32xf32>
    %56 = arith.mulf %55, %54 : vector<16x32xf32>
    %57 = arith.addf %52, %56 : vector<16x32xf32>
    %58 = vector.extract_strided_slice %23 {offsets = [0, 7], sizes = [16, 1], strides = [1, 1]} : vector<16x8xf32> to vector<16x1xf32>
    %59 = vector.extract_strided_slice %1 {offsets = [0, 224], sizes = [16, 32], strides = [1, 1]} : vector<16x256xf32> to vector<16x32xf32>
    %60 = vector.broadcast %58 : vector<16x1xf32> to vector<16x32xf32>
    %61 = arith.mulf %60, %59 : vector<16x32xf32>
    %62 = arith.addf %57, %61 : vector<16x32xf32>
    %c0_11 = arith.constant 0 : index
    %c0_12 = arith.constant 0 : index
    %63 = vector.load %arg5[%c0_11, %c0_12] : memref<16x32xf32, #tpu.memory_space<vmem>>, vector<16x32xf32>
    tpu.vector_store %arg5[%c0_11, %c0_12], %62 {strides = array<i32>} : memref<16x32xf32, #tpu.memory_space<vmem>>, vector<16x32xf32>,
    return
  }
  func.func @transform_0(%arg0: i32) -> (i32, i32) {
    %c0_i32 = arith.constant 0 : i32
    %c0_i32_0 = arith.constant 0 : i32
    return %arg0, %c0_i32 : i32, i32
  }
  func.func @transform_1(%arg0: i32) -> (i32, i32) {
    %c0_i32 = arith.constant 0 : i32
    %c0_i32_0 = arith.constant 0 : i32
    return %arg0, %c0_i32 : i32, i32
  }
  func.func @transform_2(%arg0: i32) -> (i32, i32) {
    %c0_i32 = arith.constant 0 : i32
    %c0_i32_0 = arith.constant 0 : i32
    %c0_i32_1 = arith.constant 0 : i32
    return %c0_i32, %c0_i32_0 : i32, i32
  }
  func.func @transform_3(%arg0: i32) -> (i32, i32) {
    %c0_i32 = arith.constant 0 : i32
    %c0_i32_0 = arith.constant 0 : i32
    %c0_i32_1 = arith.constant 0 : i32
    return %c0_i32, %c0_i32_0 : i32, i32
  }
  func.func @transform_4(%arg0: i32) -> (i32, i32) {
    %c0_i32 = arith.constant 0 : i32
    %c0_i32_0 = arith.constant 0 : i32
    return %arg0, %c0_i32 : i32, i32
  }
}

</mosaic_0001>

<llo_original>
// kernel: tpu_custom_call.1
$region0: #{tpu_custom_call.1}
  #allocation0 [shape = 'u32[]', space=smem, size = 0x4, offset = 0x4, fixed_abs, tag = 'smem constant byte address 0x4 - core index']
  #allocation1 [shape = 'u32[144,128]{1,0:T(1,128)}', space=vmem, size = 0x12000, scoped, tag = 'internal scratch']
  %s0 = inlined_call_operand.vmem [shape: bf16[16,256], index: 0, kind: input, shape index: {}]
  %s1 = inlined_call_operand.vmem [shape: f32[16,8], index: 1, kind: input, shape index: {}]
  %s2 = inlined_call_operand.vmem [shape: f32[256,8], index: 2, kind: input, shape index: {}]
  %s3 = inlined_call_operand.vmem [shape: f32[1,8], index: 3, kind: input, shape index: {}]
  %s4 = inlined_call_operand.hbm [shape: f32[16,32], index: 4, kind: output, shape index: {}]
  %s5 = sld [smem:[#allocation0]]
  $region26: #{tpu_custom_call.1} parent=0
    _
  %s7 = ssub.s32 1, %s5
  %s8 = scalar_select 0, %s7, %s5
  $region1: #{tpu_custom_call.1} parent=0
    #allocation2 [shape = 'u8[8192]{0}', space=vmem, size = 0x2000, scoped, tag = 'output window, operand 0, single buffered']
    #allocation3 [shape = 's32[1]{0}', space=sflag, size = 0x4, scoped, tag = 'scoped memory for tpu_custom_call.1']
    %9 = vsyncpa [#allocation3], 0
    // Predicated region
    $region2: #{tpu_custom_call.1} parent=1 // pred_check
      _
    $region3: #{tpu_custom_call.1} parent=1 // pred_check_branch
      %11 = sbr.rel (0) target = $region5
    $region4: #{tpu_custom_call.1} parent=1 // pred_region
      _
    $region5: #{tpu_custom_call.1} parent=1 // pred_fallthru
      _
    // Predicated region
    $region6: #{tpu_custom_call.1} parent=1 // pred_check
      _
    $region7: #{tpu_custom_call.1} parent=1 // pred_check_branch
      %13 = sbr.rel (0) target = $region9
    $region8: #{tpu_custom_call.1} parent=1 // pred_region
      _
    $region9: #{tpu_custom_call.1} parent=1 // pred_fallthru
      _
    // Predicated region
    $region10: #{tpu_custom_call.1} parent=1 // pred_check
      _
    $region11: #{tpu_custom_call.1} parent=1 // pred_check_branch
      %15 = sbr.rel (0) target = $region13
    $region12: #{tpu_custom_call.1} parent=1 // pred_region
      _
    $region13: #{tpu_custom_call.1} parent=1 // pred_fallthru
      _
    // Predicated region
    $region14: #{tpu_custom_call.1} parent=1 // pred_check
      _
    $region15: #{tpu_custom_call.1} parent=1 // pred_check_branch
      %17 = sbr.rel (0) target = $region17
    $region16: #{tpu_custom_call.1} parent=1 // pred_region
      _
    $region17: #{tpu_custom_call.1} parent=1 // pred_fallthru
      _
    %v18 = vld [vmem:[%s0] sm:$0xff]
    %v19 = vld [vmem:[%s0 + $0x8] sm:$0xff]
    %v20 = vunpack.c.l.bf16 %v18
    %v21 = vunpack.c.h.bf16 %v18
    %v22 = vunpack.c.l.bf16 %v19
    %v23 = vunpack.c.h.bf16 %v19
    %v24 = vld [vmem:[%s2] sm:$0xff]
    %v25 = vld [vmem:[%s2 + $0x8] sm:$0xff]
    %v26 = vld [vmem:[%s2 + $0x10] sm:$0xff]
    %v27 = vld [vmem:[%s2 + $0x18] sm:$0xff]
    %v28 = vld [vmem:[%s2 + $0x20] sm:$0xff]
    %v29 = vld [vmem:[%s2 + $0x28] sm:$0xff]
    %v30 = vld [vmem:[%s2 + $0x30] sm:$0xff]
    %v31 = vld [vmem:[%s2 + $0x38] sm:$0xff]
    %v32 = vld [vmem:[%s2 + $0x40] sm:$0xff]
    %v33 = vld [vmem:[%s2 + $0x48] sm:$0xff]
    %v34 = vld [vmem:[%s2 + $0x50] sm:$0xff]
    %v35 = vld [vmem:[%s2 + $0x58] sm:$0xff]
    %v36 = vld [vmem:[%s2 + $0x60] sm:$0xff]
    %v37 = vld [vmem:[%s2 + $0x68] sm:$0xff]
    %v38 = vld [vmem:[%s2 + $0x70] sm:$0xff]
    %v39 = vld [vmem:[%s2 + $0x78] sm:$0xff]
    %v40 = vld [vmem:[%s2 + $0x80] sm:$0xff]
    %v41 = vld [vmem:[%s2 + $0x88] sm:$0xff]
    %v42 = vld [vmem:[%s2 + $0x90] sm:$0xff]
    %v43 = vld [vmem:[%s2 + $0x98] sm:$0xff]
    %v44 = vld [vmem:[%s2 + $0xa0] sm:$0xff]
    %v45 = vld [vmem:[%s2 + $0xa8] sm:$0xff]
    %v46 = vld [vmem:[%s2 + $0xb0] sm:$0xff]
    %v47 = vld [vmem:[%s2 + $0xb8] sm:$0xff]
    %v48 = vld [vmem:[%s2 + $0xc0] sm:$0xff]
    %v49 = vld [vmem:[%s2 + $0xc8] sm:$0xff]
    %v50 = vld [vmem:[%s2 + $0xd0] sm:$0xff]
    %v51 = vld [vmem:[%s2 + $0xd8] sm:$0xff]
    %v52 = vld [vmem:[%s2 + $0xe0] sm:$0xff]
    %v53 = vld [vmem:[%s2 + $0xe8] sm:$0xff]
    %v54 = vld [vmem:[%s2 + $0xf0] sm:$0xff]
    %v55 = vld [vmem:[%s2 + $0xf8] sm:$0xff]
    %v56 = vld [vmem:[%s3] sm:$0x1]
    %v58 = vlaneseq
    %v59 = vshrl.u32 %v58, 7
    %v60 = vsub.s32 0, %v59
    %v61 = vrot.slane %v56, %v60
    %63 = vmatprep.subr.mxu0 0.0
    %64 = vmatpush1.msra.mxu0 %v24
    %65 = vmatprep.subr.mxu0 0.0
    %66 = vmatpush1.msra.mxu0 %v25
    %67 = vmatprep.subr.mxu0 0.0
    %68 = vmatpush1.msra.mxu0 %v26
    %69 = vmatprep.subr.mxu0 0.0
    %70 = vmatpush1.msra.mxu0 %v27
    %71 = vmatprep.subr.mxu0 0.0
    %72 = vmatpush1.msra.mxu0 %v28
    %73 = vmatprep.subr.mxu0 0.0
    %74 = vmatpush1.msra.mxu0 %v29
    %75 = vmatprep.subr.mxu0 0.0
    %76 = vmatpush1.msra.mxu0 %v30
    %77 = vmatprep.subr.mxu0 0.0
    %78 = vmatpush1.msra.mxu0 %v31
    %79 = vmatprep.subr.mxu0 0.0
    %80 = vmatpush1.msra.mxu0 %v32
    %81 = vmatprep.subr.mxu0 0.0
    %82 = vmatpush1.msra.mxu0 %v33
    %83 = vmatprep.subr.mxu0 0.0
    %84 = vmatpush1.msra.mxu0 %v34
    %85 = vmatprep.subr.mxu0 0.0
    %86 = vmatpush1.msra.mxu0 %v35
    %87 = vmatprep.subr.mxu0 0.0
    %88 = vmatpush1.msra.mxu0 %v36
    %89 = vmatprep.subr.mxu0 0.0
    %90 = vmatpush1.msra.mxu0 %v37
    %91 = vmatprep.subr.mxu0 0.0
    %92 = vmatpush1.msra.mxu0 %v38
    %93 = vmatprep.subr.mxu0 0.0
    %94 = vmatpush1.msra.mxu0 %v39
    %95 = vmatprep.subr.mxu0 0.0
    %96 = vmatpush1.msra.mxu0 %v40
    %97 = vmatprep.subr.mxu0 0.0
    %98 = vmatpush1.msra.mxu0 %v41
    %99 = vmatprep.subr.mxu0 0.0
    %100 = vmatpush1.msra.mxu0 %v42
    %101 = vmatprep.subr.mxu0 0.0
    %102 = vmatpush1.msra.mxu0 %v43
    %103 = vmatprep.subr.mxu0 0.0
    %104 = vmatpush1.msra.mxu0 %v44
    %105 = vmatprep.subr.mxu0 0.0
    %106 = vmatpush1.msra.mxu0 %v45
    %107 = vmatprep.subr.mxu0 0.0
    %108 = vmatpush1.msra.mxu0 %v46
    %109 = vmatprep.subr.mxu0 0.0
    %110 = vmatpush1.msra.mxu0 %v47
    %111 = vmatprep.subr.mxu0 0.0
    %112 = vmatpush1.msra.mxu0 %v48
    %113 = vmatprep.subr.mxu0 0.0
    %114 = vmatpush1.msra.mxu0 %v49
    %115 = vmatprep.subr.mxu0 0.0
    %116 = vmatpush1.msra.mxu0 %v50
    %117 = vmatprep.subr.mxu0 0.0
    %118 = vmatpush1.msra.mxu0 %v51
    %119 = vmatprep.subr.mxu0 0.0
    %120 = vmatpush1.msra.mxu0 %v52
    %121 = vmatprep.subr.mxu0 0.0
    %122 = vmatpush1.msra.mxu0 %v53
    %123 = vmatprep.subr.mxu0 0.0
    %124 = vmatpush1.msra.mxu0 %v54
    %125 = vmatprep.subr.mxu0 0.0
    %126 = vmatpush1.msra.mxu0 %v55
    %127 = vmatprep.mubr.f32.mxu0 %v21
    %128 = vmatmul.mubr.f32.gmra.mrb[0].mxu0 %v20
    %v129 = vpop.f32.mrb[0].mxu0
    %v130 = vadd.f32 %v61, %v129
    %v131 = vpop.f32.mrb[0].mxu0
    %132 = vmatprep.mubr.f32.mxu0 %v23
    %133 = vmatmul.mubr.f32.gmra.mrb[0].mxu0 %v22
    %v134 = vpop.f32.mrb[0].mxu0
    %v135 = vadd.f32 %v61, %v134
    %v136 = vpop.f32.mrb[0].mxu0
    %137 = vdwg.mxu0
    %vm138 = vcmp.ge.f32.partialorder %v130, 0.0
    %vm139 = vcmp.ge.f32.partialorder %v135, 0.0
    %v140 = vmul.f32 %v130, 0.2
    %v141 = vmul.f32 %v135, 0.2
    %v142 = vsel %vm138, %v130, %v140
    %v143 = vsel %vm139, %v135, %v141
    %v144 = vld [vmem:[%s1] sm:$0xff]
    %v145 = vld [vmem:[%s1 + $0x8] sm:$0xff]
    %v146 = vadd.f32 %v142, %v144
    %v147 = vadd.f32 %v143, %v145
    %vm148 = vcmask 64512
    %v149 = vsel %vm148, %v146, -inf
    %150 = vmax.xlane.f32.xlu0 %v149
    %v151 = vpop.xlane.xlu0 %150
    %v152 = vsel %vm148, %v147, -inf
    %153 = vmax.xlane.f32.xlu0 %v152
    %v154 = vpop.xlane.xlu0 %153
    %v155 = vsub.f32 %v146, %v151
    %v156 = vsub.f32 %v147, %v154
    %v157 = vmul.f32 %v155, 1.442695
    %v158 = vpow.pop %v157
    %v159 = vmul.f32 %v156, 1.442695
    %v160 = vpow.pop %v159
    %v161 = vsel %vm148, %v158, 0.0
    %162 = vadd.xlane.f32.xlu0 %v161
    %v163 = vpop.xlane.xlu0 %162
    %v164 = vsel %vm148, %v160, 0.0
    %165 = vadd.xlane.f32.xlu0 %v164
    %v166 = vpop.xlane.xlu0 %165
    %v167 = vrcp.pop %v163
    %v168 = vrcp.pop %v166
    %v169 = vmul.f32 %v158, %v167
    %v170 = vmul.f32 %v160, %v168
    %172 = vset.pattern.permute.xlu0 0
    %173 = vperm.xlu0 %172, %v169
    %v174 = vpop.permute.xlu0 %173
    %177 = vset.pattern.permute.xlu0 0
    %178 = vperm.xlu0 %177, %v170
    %v179 = vpop.permute.xlu0 %178
    %v181 = vmul.f32 %v174, %v20
    %v182 = vmul.f32 %v179, %v22
    %183 = vset.pattern.permute.xlu0 1
    %184 = vperm.xlu0 %183, %v169
    %v185 = vpop.permute.xlu0 %184
    %187 = vset.pattern.permute.xlu0 1
    %188 = vperm.xlu0 %187, %v170
    %v189 = vpop.permute.xlu0 %188
    %v191 = vmul.f32 %v185, %v20
    %v192 = vmul.f32 %v189, %v22
    %195 = vrot.lane.b32.xlu0 %v191, 96
    %v196 = vpop.permute.xlu0 %195
    %197 = vrot.lane.b32.xlu0 %v192, 96
    %v198 = vpop.permute.xlu0 %197
    %v201 = vadd.f32 %v181, %v196
    %v202 = vadd.f32 %v182, %v198
    %203 = vset.pattern.permute.xlu0 2
    %204 = vperm.xlu0 %203, %v169
    %v205 = vpop.permute.xlu0 %204
    %207 = vset.pattern.permute.xlu0 2
    %208 = vperm.xlu0 %207, %v170
    %v209 = vpop.permute.xlu0 %208
    %v211 = vmul.f32 %v205, %v20
    %v212 = vmul.f32 %v209, %v22
    %215 = vrot.lane.b32.xlu0 %v211, 64
    %v216 = vpop.permute.xlu0 %215
    %217 = vrot.lane.b32.xlu0 %v212, 64
    %v218 = vpop.permute.xlu0 %217
    %v221 = vadd.f32 %v201, %v216
    %v222 = vadd.f32 %v202, %v218
    %223 = vset.pattern.permute.xlu0 3
    %224 = vperm.xlu0 %223, %v169
    %v225 = vpop.permute.xlu0 %224
    %227 = vset.pattern.permute.xlu0 3
    %228 = vperm.xlu0 %227, %v170
    %v229 = vpop.permute.xlu0 %228
    %v231 = vmul.f32 %v225, %v20
    %v232 = vmul.f32 %v229, %v22
    %235 = vrot.lane.b32.xlu0 %v231, 32
    %v236 = vpop.permute.xlu0 %235
    %237 = vrot.lane.b32.xlu0 %v232, 32
    %v238 = vpop.permute.xlu0 %237
    %v241 = vadd.f32 %v221, %v236
    %v242 = vadd.f32 %v222, %v238
    %243 = vset.pattern.permute.xlu0 4
    %244 = vperm.xlu0 %243, %v169
    %v245 = vpop.permute.xlu0 %244
    %247 = vset.pattern.permute.xlu0 4
    %248 = vperm.xlu0 %247, %v170
    %v249 = vpop.permute.xlu0 %248
    %v251 = vmul.f32 %v245, %v21
    %v252 = vmul.f32 %v249, %v23
    %v253 = vadd.f32 %v241, %v251
    %v254 = vadd.f32 %v242, %v252
    %255 = vset.pattern.permute.xlu0 5
    %256 = vperm.xlu0 %255, %v169
    %v257 = vpop.permute.xlu0 %256
    %259 = vset.pattern.permute.xlu0 5
    %260 = vperm.xlu0 %259, %v170
    %v261 = vpop.permute.xlu0 %260
    %v263 = vmul.f32 %v257, %v21
    %v264 = vmul.f32 %v261, %v23
    %267 = vrot.lane.b32.xlu0 %v263, 96
    %v268 = vpop.permute.xlu0 %267
    %269 = vrot.lane.b32.xlu0 %v264, 96
    %v270 = vpop.permute.xlu0 %269
    %v273 = vadd.f32 %v253, %v268
    %v274 = vadd.f32 %v254, %v270
    %275 = vset.pattern.permute.xlu0 6
    %276 = vperm.xlu0 %275, %v169
    %v277 = vpop.permute.xlu0 %276
    %279 = vset.pattern.permute.xlu0 6
    %280 = vperm.xlu0 %279, %v170
    %v281 = vpop.permute.xlu0 %280
    %v283 = vmul.f32 %v277, %v21
    %v284 = vmul.f32 %v281, %v23
    %287 = vrot.lane.b32.xlu0 %v283, 64
    %v288 = vpop.permute.xlu0 %287
    %289 = vrot.lane.b32.xlu0 %v284, 64
    %v290 = vpop.permute.xlu0 %289
    %v293 = vadd.f32 %v273, %v288
    %v294 = vadd.f32 %v274, %v290
    %295 = vset.pattern.permute.xlu0 7
    %296 = vperm.xlu0 %295, %v169
    %v297 = vpop.permute.xlu0 %296
    %299 = vset.pattern.permute.xlu0 7
    %300 = vperm.xlu0 %299, %v170
    %v301 = vpop.permute.xlu0 %300
    %v303 = vmul.f32 %v297, %v21
    %v304 = vmul.f32 %v301, %v23
    %307 = vrot.lane.b32.xlu0 %v303, 32
    %v308 = vpop.permute.xlu0 %307
    %309 = vrot.lane.b32.xlu0 %v304, 32
    %v310 = vpop.permute.xlu0 %309
    %v313 = vadd.f32 %v293, %v308
    %v314 = vadd.f32 %v294, %v310
    %vm315 = vcmask 261120
    %316 = vst.msk [vmem:[#allocation2] sm:$0xff] %vm315, %v313
    %317 = vst.msk [vmem:[#allocation2 + $0x8] sm:$0xff] %vm315, %v314
    // Predicated region
    $region18: #{tpu_custom_call.1} parent=1 // pred_check
      _
    $region19: #{tpu_custom_call.1} parent=1 // pred_check_branch
      %319 = sbr.rel (0) target = $region21
    $region20: #{tpu_custom_call.1} parent=1 // pred_region
      %s321 = ssub.s32 256, 256
      %322 = vsyncadd [#allocation3], %s321
      %s323 = sshll.u32 [#allocation2], 4
      %s324 = int_to_ptr.vmem [resolvable:$true] %s323
      %329 = dma.vmem_to_hbm [thread:$0]  %s324, 256, %s4, [#allocation3], 128, 128, 8
    $region21: #{tpu_custom_call.1} parent=1 // pred_fallthru
      _
    // Predicated region
    $region22: #{tpu_custom_call.1} parent=1 // pred_check
      _
    $region23: #{tpu_custom_call.1} parent=1 // pred_check_branch
      %331 = sbr.rel (0) target = $region25
    $region24: #{tpu_custom_call.1} parent=1 // pred_region
      %332 = dma.done [#allocation3], 256
    $region25: #{tpu_custom_call.1} parent=1 // pred_fallthru
      _
    %333 = vsyncpa [#allocation3], 1

</llo_original>
